<compile_context>
chip_gen: v5e
topology: v5e:2x2
jax: 0.10.0
libtpu: 0.0.40
codegen_flags: <defaults>
</compile_context>

<pallas_src>
import jax
import jax.numpy as jnp
from jax.experimental import pallas as pl
from jax.experimental.pallas import tpu as pltpu

PATCH = 4        # surrogate patch size (ViT-L/14 uses 14)
DIM = 128        # surrogate hidden width (real module uses 768) - lane aligned
OUT_DIM = 1
LN_EPS = 1e-5
RES_LANES = 128  # lane-dense fc-result width (only column 0 meaningful)


def _round_up(x, m):
    return (x + m - 1) // m * m


# ---------------------------------------------------------------- kernel ----

def _fused_kernel(p_ref, wp_ref, add_ref, g_ref, bta_ref, wfc_ref,
                  tok_ref, res_ref):
    """Bb batch elements per grid step (grid=(B//Bb,), "parallel").

    - patch embed: one (Bb*Tp, K) bf16 MXU matmul, f32 accumulation.
      Tp is a multiple of 16 so collapsing (Bb, Tp, K) -> (Bb*Tp, K) is a
      layout-preserving relabel (no VMEM copy).  Row 0 of every batch group
      is the (zero) class-token slot; class_emb / pos_emb / conv bias are
      pre-folded into the additive `add` term, so token assembly needs no
      sublane-offset writes.
    - ln_post: strictly float32, single-pass statistics.
    - fc head: VPU multiply + lane reduction on the Bb class rows (OUT_DIM=1
      would waste a full MXU pass); bias added in the wrapper.
    """
    Bb, Tp, K = p_ref.shape
    D = wp_ref.shape[1]
    T = tok_ref.shape[1]

    # conv1(stride=patch) as one big matmul on the MXU.
    p2 = p_ref[...].reshape(Bb * Tp, K)                         # bf16, relabel
    emb = jnp.dot(p2, wp_ref[...], preferred_element_type=jnp.float32)
    tokens = emb.reshape(Bb, Tp, D) + add_ref[...]              # (Bb, Tp, D) f32

    # LayerNorm in f32, single sweep: var = E[x^2] - mean^2.
    inv_d = 1.0 / D
    s1 = jnp.sum(tokens, axis=-1, keepdims=True)
    s2 = jnp.sum(tokens * tokens, axis=-1, keepdims=True)
    mean = s1 * inv_d
    var = s2 * inv_d - mean * mean
    y = (tokens - mean) * jax.lax.rsqrt(var + LN_EPS)
    y = y * g_ref[...] + bta_ref[...]                           # (Bb, Tp, D)

    # bf16 token writeback; pad rows T..Tp are never stored to HBM.
    tok_ref[...] = y[:, :T, :].astype(tok_ref.dtype)

    # fc head on the class-token features (row 0 of each batch group),
    # all Bb rows in one VPU pass; lane-dense store, wrapper slices col 0.
    feat = y[:, 0:1, :]                                         # (Bb, 1, D) f32
    res = jnp.sum(feat * wfc_ref[...], axis=-1, keepdims=True)  # (Bb, 1, 1)
    res_ref[...] = jnp.broadcast_to(res, res_ref.shape).astype(res_ref.dtype)


# ------------------------------------------------------------- parameters ---

def init_params(key, c_in=3, patch=PATCH, dim=DIM, out_dim=OUT_DIM,
                n_tokens=None):
    assert out_dim == 1  # fc weight stored as a single lane-dense row
    ks = jax.random.split(key, 4)
    k = c_in * patch * patch
    # Contraction dim stays unpadded (block last dim == full array dim).
    w_patch = (0.02 * jax.random.normal(ks[0], (k, dim), jnp.float32)
               ).astype(jnp.bfloat16)
    return dict(
        w_patch=w_patch,                                        # (K, D) bf16
        b_patch=jnp.zeros((1, dim), jnp.float32),
        class_emb=0.02 * jax.random.normal(ks[1], (1, 1, dim), jnp.float32),
        pos_emb=0.02 * jax.random.normal(ks[2], (1, n_tokens, dim),
                                         jnp.float32),
        ln_gamma=jnp.ones((1, dim), jnp.float32),
        ln_beta=jnp.zeros((1, dim), jnp.float32),
        w_fc=0.02 * jax.random.normal(ks[3], (1, dim), jnp.float32),  # (1, D)
        b_fc=jnp.zeros((1,), jnp.float32),
    )


# ----------------------------------------------------------------- forward --

@jax.jit
def net_stage1_forward(x, params):
    """x: NCHW image batch. Returns (result, cls_tokens)."""
    B, C, H, W = x.shape
    p = PATCH
    nh, nw = H // p, W // p
    N = nh * nw
    T = N + 1                        # class token + patch tokens
    Tp = _round_up(T, 16)            # bf16 sublane tile (6% waste at real dims)
    K = C * p * p
    D = DIM

    # conv1(stride=patch) == gather of non-overlapping patches.
    # TODO(synk): the patch gather (reshape/transpose) is not expressible as a
    # rectangular BlockSpec, so it stays as XLA glue; pad+bf16 cast fuse into
    # the same producing copy.
    xp = x.reshape(B, C, nh, p, nw, p).transpose(0, 2, 4, 1, 3, 5)
    patches = xp.reshape(B, N, K)
    # Row 0 = class-token slot (zero row -> contributes nothing to the matmul);
    # rows T..Tp pad to the bf16 sublane tile.  K is left unpadded.
    patches = jnp.pad(patches, ((0, 0), (1, Tp - 1 - N), (0, 0)))
    patches = patches.astype(jnp.bfloat16)

    # Fold class_emb / pos_emb / conv bias into one additive (1, Tp, D) term:
    #   row 0     : class_emb + pos[0]
    #   rows 1..N : b_patch   + pos[1..N]
    #   rows N+1..: 0 (pad tokens; never stored)
    add0 = params["class_emb"] + params["pos_emb"][:, :1, :]
    addp = params["b_patch"][None] + params["pos_emb"][:, 1:, :]
    add = jnp.concatenate([add0, addp], axis=1)
    add = jnp.pad(add, ((0, 0), (0, Tp - T), (0, 0)))

    # Batch-block size: target ~256 MXU M-rows per grid step, but keep the
    # grid length >= 2 when B > 1 so v7x's second TensorCore has work.
    # (At real ViT-L/14 dims, size Bb against per-generation VMEM: ~8-12 on
    # v7x's 64 MiB, ~16-24 on v5e/v6e's 128 MiB.)
    bb = max(1, min(B, 256 // Tp))
    if B > 1 and B // bb < 2:
        bb = max(1, B // 2)
    while B % bb:
        bb -= 1
    grid = (B // bb,)

    # TODO(synk): pretrained CLIP ViT-L/14 transformer blocks are not
    # reproducible in-script; surrogate encoder = patch-embed + ln_post only.
    tok_out, res_out = pl.pallas_call(
        _fused_kernel,
        out_shape=(jax.ShapeDtypeStruct((B, T, D), jnp.bfloat16),
                   jax.ShapeDtypeStruct((B, 1, RES_LANES), jnp.float32)),
        grid=grid,
        in_specs=[
            pl.BlockSpec((bb, Tp, K), lambda g: (g, 0, 0)),      # patches bf16
            pl.BlockSpec((K, D), lambda g: (0, 0)),              # w_patch bf16
            pl.BlockSpec((1, Tp, D), lambda g: (0, 0, 0)),       # folded adds
            pl.BlockSpec((1, D), lambda g: (0, 0)),              # ln gamma
            pl.BlockSpec((1, D), lambda g: (0, 0)),              # ln beta
            pl.BlockSpec((1, D), lambda g: (0, 0)),              # fc weight
        ],
        out_specs=(pl.BlockSpec((bb, T, D), lambda g: (g, 0, 0)),
                   pl.BlockSpec((bb, 1, RES_LANES), lambda g: (g, 0, 0))),
        compiler_params=pltpu.CompilerParams(
            dimension_semantics=("parallel",)),
    )(patches, params["w_patch"], add,
      params["ln_gamma"], params["ln_beta"], params["w_fc"])

    result = res_out[:, 0, :OUT_DIM] + params["b_fc"]   # fc bias in wrapper
    return result, tok_out                              # cls_tokens in bf16


# ------------------------------------------------------------ reference -----

def _reference_forward(x, params):
    """Pure-JAX reference of the same surrogate math (f32 LN, bf16 matmul)."""
    B, C, H, W = x.shape
    p = PATCH
    nh, nw = H // p, W // p
    N = nh * nw
    xp = x.reshape(B, C, nh, p, nw, p).transpose(0, 2, 4, 1, 3, 5)
    patches = xp.reshape(B, N, C * p * p).astype(jnp.bfloat16)
    emb = jnp.dot(patches, params["w_patch"],
                  preferred_element_type=jnp.float32)
    patch_tok = emb + params["b_patch"][None] + params["pos_emb"][:, 1:, :]
    cls_tok = jnp.broadcast_to(
        params["class_emb"] + params["pos_emb"][:, :1, :], (B, 1, DIM))
    tokens = jnp.concatenate([cls_tok, patch_tok], axis=1)
    mean = jnp.mean(tokens, axis=-1, keepdims=True)
    var = jnp.mean((tokens - mean) ** 2, axis=-1, keepdims=True)
    y = (tokens - mean) * jax.lax.rsqrt(var + LN_EPS)
    y = y * params["ln_gamma"][None] + params["ln_beta"][None]
    result = jnp.sum(y[:, 0, :] * params["w_fc"], axis=-1, keepdims=True)
    return result + params["b_fc"], y


# -------------------------------------------------------------------- main --

if __name__ == "__main__":
    key = jax.random.PRNGKey(0)
    kx, kp = jax.random.split(key)

    B, C, H, W = 2, 3, 16, 16
    n_tokens = 1 + (H // PATCH) * (W // PATCH)

    x = jax.random.normal(kx, (B, C, H, W), jnp.float32)
    params = init_params(kp, c_in=C, n_tokens=n_tokens)

    result, cls_tokens = net_stage1_forward(x, params)
    jax.block_until_ready((result, cls_tokens))

    ref_result, ref_tokens = _reference_forward(x, params)

    assert result.shape == (B, OUT_DIM)
    assert cls_tokens.shape == (B, n_tokens, DIM)
    assert cls_tokens.dtype == jnp.bfloat16
    assert jnp.all(jnp.isfinite(result))
    assert jnp.allclose(result, ref_result, atol=1e-2, rtol=1e-2)
    assert jnp.allclose(cls_tokens.astype(jnp.float32), ref_tokens,
                        atol=3e-2, rtol=3e-2)
    print("KERNEL_OK")
</pallas_src>

<mosaic_0001>
module attributes {stable_mosaic.version = 11 : i64} {
  func.func @_fused_kernel(%arg0: i32, %arg1: memref<1x32x48xbf16, #tpu.memory_space<vmem>>, %arg2: memref<48x128xbf16, #tpu.memory_space<vmem>>, %arg3: memref<1x32x128xf32, #tpu.memory_space<vmem>>, %arg4: memref<1x128xf32, #tpu.memory_space<vmem>>, %arg5: memref<1x128xf32, #tpu.memory_space<vmem>>, %arg6: memref<1x128xf32, #tpu.memory_space<vmem>>, %arg7: memref<1x17x128xbf16, #tpu.memory_space<vmem>>, %arg8: memref<1x1x128xf32, #tpu.memory_space<vmem>>) attributes {dimension_semantics = [#tpu.dimension_semantics<parallel>], iteration_bounds = array<i64: 2>, scalar_prefetch = 0 : i64, scratch_operands = 0 : i64, tpu.core_type = #tpu.core_type<tc>, window_params = [{transform_indices = @transform_0, window_bounds = array<i64: 1, 32, 48>}, {pipeline_mode = #tpu.pipeline_mode<synchronous>, transform_indices = @transform_1, window_bounds = array<i64: 48, 128>}, {pipeline_mode = #tpu.pipeline_mode<synchronous>, transform_indices = @transform_2, window_bounds = array<i64: 1, 32, 128>}, {pipeline_mode = #tpu.pipeline_mode<synchronous>, transform_indices = @transform_3, window_bounds = array<i64: 1, 128>}, {pipeline_mode = #tpu.pipeline_mode<synchronous>, transform_indices = @transform_4, window_bounds = array<i64: 1, 128>}, {pipeline_mode = #tpu.pipeline_mode<synchronous>, transform_indices = @transform_5, window_bounds = array<i64: 1, 128>}, {transform_indices = @transform_6, window_bounds = array<i64: 1, 17, 128>}, {transform_indices = @transform_7, window_bounds = array<i64: 1, 1, 128>}]} {
    %c0 = arith.constant 0 : index
    %c0_0 = arith.constant 0 : index
    %c0_1 = arith.constant 0 : index
    %0 = vector.load %arg1[%c0, %c0_0, %c0_1] : memref<1x32x48xbf16, #tpu.memory_space<vmem>>, vector<1x32x48xbf16>
    %1 = vector.shape_cast %0 : vector<1x32x48xbf16> to vector<32x48xbf16>
    %c0_2 = arith.constant 0 : index
    %c0_3 = arith.constant 0 : index
    %2 = vector.load %arg2[%c0_2, %c0_3] : memref<48x128xbf16, #tpu.memory_space<vmem>>, vector<48x128xbf16>
    %cst = arith.constant dense<0.000000e+00> : vector<32x128xf32>
    %3 = tpu.matmul %1, %2, %cst {dimension_numbers = #tpu.dot_dimension_numbers<[1], [0], [0], [1], [0, 0, 1, 1], [], []>} : vector<32x48xbf16>, vector<48x128xbf16>, vector<32x128xf32> -> vector<32x128xf32>
    %4 = vector.shape_cast %3 : vector<32x128xf32> to vector<1x32x128xf32>
    %c0_4 = arith.constant 0 : index
    %c0_5 = arith.constant 0 : index
    %c0_6 = arith.constant 0 : index
    %5 = vector.load %arg3[%c0_4, %c0_5, %c0_6] : memref<1x32x128xf32, #tpu.memory_space<vmem>>, vector<1x32x128xf32>
    %6 = arith.addf %4, %5 : vector<1x32x128xf32>
    %cst_7 = arith.constant dense<0.000000e+00> : vector<1x32xf32>
    %7 = vector.multi_reduction <add>, %6, %cst_7 [2] : vector<1x32x128xf32> to vector<1x32xf32>
    %8 = vector.shape_cast %7 : vector<1x32xf32> to vector<1x32x1xf32>
    %9 = arith.mulf %6, %6 : vector<1x32x128xf32>
    %cst_8 = arith.constant dense<0.000000e+00> : vector<1x32xf32>
    %10 = vector.multi_reduction <add>, %9, %cst_8 [2] : vector<1x32x128xf32> to vector<1x32xf32>
    %11 = vector.shape_cast %10 : vector<1x32xf32> to vector<1x32x1xf32>
    %cst_9 = arith.constant 7.812500e-03 : f32
    %12 = vector.broadcast %cst_9 : f32 to vector<1x32x1xf32>
    %13 = arith.mulf %8, %12 : vector<1x32x1xf32>
    %cst_10 = arith.constant 7.812500e-03 : f32
    %14 = vector.broadcast %cst_10 : f32 to vector<1x32x1xf32>
    %15 = arith.mulf %11, %14 : vector<1x32x1xf32>
    %16 = arith.mulf %13, %13 : vector<1x32x1xf32>
    %17 = arith.subf %15, %16 : vector<1x32x1xf32>
    %18 = vector.broadcast %13 : vector<1x32x1xf32> to vector<1x32x128xf32>
    %19 = arith.subf %6, %18 : vector<1x32x128xf32>
    %cst_11 = arith.constant 9.99999974E-6 : f32
    %20 = vector.broadcast %cst_11 : f32 to vector<1x32x1xf32>
    %21 = arith.addf %17, %20 : vector<1x32x1xf32>
    %22 = math.rsqrt %21 : vector<1x32x1xf32>
    %23 = vector.broadcast %22 : vector<1x32x1xf32> to vector<1x32x128xf32>
    %24 = arith.mulf %19, %23 : vector<1x32x128xf32>
    %c0_12 = arith.constant 0 : index
    %c0_13 = arith.constant 0 : index
    %25 = vector.load %arg4[%c0_12, %c0_13] : memref<1x128xf32, #tpu.memory_space<vmem>>, vector<1x128xf32>
    %26 = vector.shape_cast %25 : vector<1x128xf32> to vector<1x1x128xf32>
    %27 = vector.broadcast %26 : vector<1x1x128xf32> to vector<1x32x128xf32>
    %28 = arith.mulf %24, %27 : vector<1x32x128xf32>
    %c0_14 = arith.constant 0 : index
    %c0_15 = arith.constant 0 : index
    %29 = vector.load %arg5[%c0_14, %c0_15] : memref<1x128xf32, #tpu.memory_space<vmem>>, vector<1x128xf32>
    %30 = vector.shape_cast %29 : vector<1x128xf32> to vector<1x1x128xf32>
    %31 = vector.broadcast %30 : vector<1x1x128xf32> to vector<1x32x128xf32>
    %32 = arith.addf %28, %31 : vector<1x32x128xf32>
    %33 = vector.extract_strided_slice %32 {offsets = [0, 0, 0], sizes = [1, 17, 128], strides = [1, 1, 1]} : vector<1x32x128xf32> to vector<1x17x128xf32>
    %34 = arith.truncf %33 : vector<1x17x128xf32> to vector<1x17x128xbf16>
    %c0_16 = arith.constant 0 : index
    %c0_17 = arith.constant 0 : index
    %c0_18 = arith.constant 0 : index
    %35 = vector.load %arg7[%c0_16, %c0_17, %c0_18] : memref<1x17x128xbf16, #tpu.memory_space<vmem>>, vector<1x17x128xbf16>
    tpu.vector_store %arg7[%c0_16, %c0_17, %c0_18], %34 {strides = array<i32>} : memref<1x17x128xbf16, #tpu.memory_space<vmem>>, vector<1x17x128xbf16>,
    %36 = vector.extract_strided_slice %32 {offsets = [0, 0, 0], sizes = [1, 1, 128], strides = [1, 1, 1]} : vector<1x32x128xf32> to vector<1x1x128xf32>
    %c0_19 = arith.constant 0 : index
    %c0_20 = arith.constant 0 : index
    %37 = vector.load %arg6[%c0_19, %c0_20] : memref<1x128xf32, #tpu.memory_space<vmem>>, vector<1x128xf32>
    %38 = vector.shape_cast %37 : vector<1x128xf32> to vector<1x1x128xf32>
    %39 = arith.mulf %36, %38 : vector<1x1x128xf32>
    %cst_21 = arith.constant dense<0.000000e+00> : vector<1x1xf32>
    %40 = vector.multi_reduction <add>, %39, %cst_21 [2] : vector<1x1x128xf32> to vector<1x1xf32>
    %41 = vector.shape_cast %40 : vector<1x1xf32> to vector<1x1x1xf32>
    %42 = vector.shape_cast %41 : vector<1x1x1xf32> to vector<1x1x1xf32>
    %43 = vector.broadcast %42 : vector<1x1x1xf32> to vector<1x1x128xf32>
    %c0_22 = arith.constant 0 : index
    %c0_23 = arith.constant 0 : index
    %c0_24 = arith.constant 0 : index
    %44 = vector.load %arg8[%c0_22, %c0_23, %c0_24] : memref<1x1x128xf32, #tpu.memory_space<vmem>>, vector<1x1x128xf32>
    tpu.vector_store %arg8[%c0_22, %c0_23, %c0_24], %43 {strides = array<i32>} : memref<1x1x128xf32, #tpu.memory_space<vmem>>, vector<1x1x128xf32>,
    return
  }
  func.func @transform_0(%arg0: i32) -> (i32, i32, i32) {
    %c0_i32 = arith.constant 0 : i32
    %c0_i32_0 = arith.constant 0 : i32
    %c0_i32_1 = arith.constant 0 : i32
    return %arg0, %c0_i32, %c0_i32_0 : i32, i32, i32
  }
  func.func @transform_1(%arg0: i32) -> (i32, i32) {
    %c0_i32 = arith.constant 0 : i32
    %c0_i32_0 = arith.constant 0 : i32
    %c0_i32_1 = arith.constant 0 : i32
    return %c0_i32, %c0_i32_0 : i32, i32
  }
  func.func @transform_2(%arg0: i32) -> (i32, i32, i32) {
    %c0_i32 = arith.constant 0 : i32
    %c0_i32_0 = arith.constant 0 : i32
    %c0_i32_1 = arith.constant 0 : i32
    %c0_i32_2 = arith.constant 0 : i32
    return %c0_i32, %c0_i32_0, %c0_i32_1 : i32, i32, i32
  }
  func.func @transform_3(%arg0: i32) -> (i32, i32) {
    %c0_i32 = arith.constant 0 : i32
    %c0_i32_0 = arith.constant 0 : i32
    %c0_i32_1 = arith.constant 0 : i32
    return %c0_i32, %c0_i32_0 : i32, i32
  }
  func.func @transform_4(%arg0: i32) -> (i32, i32) {
    %c0_i32 = arith.constant 0 : i32
    %c0_i32_0 = arith.constant 0 : i32
    %c0_i32_1 = arith.constant 0 : i32
    return %c0_i32, %c0_i32_0 : i32, i32
  }
  func.func @transform_5(%arg0: i32) -> (i32, i32) {
    %c0_i32 = arith.constant 0 : i32
    %c0_i32_0 = arith.constant 0 : i32
    %c0_i32_1 = arith.constant 0 : i32
    return %c0_i32, %c0_i32_0 : i32, i32
  }
  func.func @transform_6(%arg0: i32) -> (i32, i32, i32) {
    %c0_i32 = arith.constant 0 : i32
    %c0_i32_0 = arith.constant 0 : i32
    %c0_i32_1 = arith.constant 0 : i32
    return %arg0, %c0_i32, %c0_i32_0 : i32, i32, i32
  }
  func.func @transform_7(%arg0: i32) -> (i32, i32, i32) {
    %c0_i32 = arith.constant 0 : i32
    %c0_i32_0 = arith.constant 0 : i32
    %c0_i32_1 = arith.constant 0 : i32
    return %arg0, %c0_i32, %c0_i32_0 : i32, i32, i32
  }
}

</mosaic_0001>

<llo_original>
// kernel: net_stage1_forward.1
$region0: #{net_stage1_forward.1}
  #allocation0 [shape = 'u32[]', space=smem, size = 0x4, offset = 0x4, fixed_abs, tag = 'smem constant byte address 0x4 - core index']
  #allocation1 [shape = 'u32[72,128]{1,0:T(1,128)}', space=vmem, size = 0x9000, scoped, tag = 'internal scratch']
  %s0 = inlined_call_operand.vmem [shape: bf16[2,32,48], index: 0, kind: input, shape index: {}]
  %s1 = inlined_call_operand.vmem [shape: bf16[48,128], index: 1, kind: input, shape index: {}]
  %s2 = inlined_call_operand.vmem [shape: f32[1,32,128], index: 2, kind: input, shape index: {}]
  %s3 = inlined_call_operand.vmem [shape: f32[1,128], index: 3, kind: input, shape index: {}]
  %s4 = inlined_call_operand.vmem [shape: f32[1,128], index: 4, kind: input, shape index: {}]
  %s5 = inlined_call_operand.vmem [shape: f32[1,128], index: 5, kind: input, shape index: {}]
  %s6 = inlined_call_operand.vmem [shape: bf16[2,17,128], index: 6, kind: output, shape index: {0}]
  %s7 = inlined_call_operand.vmem [shape: f32[2,1,128], index: 7, kind: output, shape index: {1}]
  %8 = xla_tuple %s6, %s7
  %s9 = sld [smem:[#allocation0]]
  $region65: #{net_stage1_forward.1} parent=0
    _
  %s11 = ssub.s32 1, %s9
  %s12 = scalar_select 0, %s11, %s9
  loop: start=0, step=1, limit=4
  $region2: #{net_stage1_forward.1} parent=0 // loop_pre_header
    _
  $region3: #{net_stage1_forward.1} parent=0 // loop_header
    %s14 = sphi 0, %s18
    %p15 = scmp.ge.s32.totalorder %s14, 4
    %s24 = sphi 0, %s26
    %s27 = sphi 0, %s24
    %s28 = sphi 0, %s27
    %s44 = sphi 0, %s28
    %s48 = sphi 0, %s48
    %s50 = sphi 0, %s48
    %s51 = sphi 0, %s50
    %s65 = sphi 0, %s51
    %s69 = sphi 0, %s69
    %s71 = sphi 0, %s69
    %s72 = sphi 0, %s71
    %s86 = sphi 0, %s72
    %s90 = sphi 0, %s90
    %s92 = sphi 0, %s90
    %s93 = sphi 0, %s92
    %s107 = sphi 0, %s93
    %s111 = sphi 0, %s111
    %s113 = sphi 0, %s111
    %s114 = sphi 0, %s113
    %s128 = sphi 0, %s114
    %s132 = sphi 0, %s132
    %s134 = sphi 0, %s132
    %s135 = sphi 0, %s134
    %s149 = sphi 0, %s135
    %s155 = sphi 0, %s157
    %s158 = sphi 0, %s155
    %s159 = sphi 0, %s158
    %s175 = sphi 0, %s159
    %s181 = sphi 0, %s183
    %s184 = sphi 0, %s181
    %s185 = sphi 0, %s184
    %s201 = sphi 0, %s185
  $region4: #{net_stage1_forward.1} parent=0 // loop_header_branch
    %17 = sbr.rel (%p15) target = $region8
  $region5: #{net_stage1_forward.1} parent=0 // loop_body
    %s19 = ssub.s32 %s14, 1
    %s20 = ssub.s32 %s14, 2
    %s21 = sadd.s32 %s14, 1
    %s22 = ssub.s32 %s14, %s21
    %p23 = scmp.eq.s32.totalorder %s22, 0
    %s25 = sadd.s32 %s24, 1
    %s26 = scalar_select %p23, %s24, %s25
    %p29 = pneg %p23
    %p30 = scmp.eq.s32.totalorder %s14, 1
    %p31 = por %p29, %p30
    %p32 = scmp.ne.s32.totalorder %s24, %s27
    %p33 = scmp.eq.s32.totalorder %s14, 0
    %p34 = por %p32, %p33
    %p35 = scmp.ne.s32.totalorder %s24, %s27
    %p36 = scmp.eq.s32.totalorder %s19, 1
    %p37 = por %p35, %p36
    %p38 = scmp.ne.s32.totalorder %s27, %s28
    %p39 = scmp.eq.s32.totalorder %s19, 0
    %p40 = por %p38, %p39
    %p41 = scmp.ne.s32.totalorder %s27, %s28
    %p42 = scmp.eq.s32.totalorder %s20, 1
    %p43 = por %p41, %p42
    %p45 = scmp.ne.s32.totalorder %s28, %s44
    %p46 = scmp.eq.s32.totalorder %s20, 0
    %p47 = por %p45, %p46
    %s49 = sadd.s32 %s48, 1
    %p52 = scmp.eq.s32.totalorder %s14, 1
    %p53 = scmp.ne.s32.totalorder %s48, %s50
    %p54 = scmp.eq.s32.totalorder %s14, 0
    %p55 = por %p53, %p54
    %p56 = scmp.ne.s32.totalorder %s48, %s50
    %p57 = scmp.eq.s32.totalorder %s19, 1
    %p58 = por %p56, %p57
    %p59 = scmp.ne.s32.totalorder %s50, %s51
    %p60 = scmp.eq.s32.totalorder %s19, 0
    %p61 = por %p59, %p60
    %p62 = scmp.ne.s32.totalorder %s50, %s51
    %p63 = scmp.eq.s32.totalorder %s20, 1
    %p64 = por %p62, %p63
    %p66 = scmp.ne.s32.totalorder %s51, %s65
    %p67 = scmp.eq.s32.totalorder %s20, 0
    %p68 = por %p66, %p67
    %s70 = sadd.s32 %s69, 1
    %p73 = scmp.eq.s32.totalorder %s14, 1
    %p74 = scmp.ne.s32.totalorder %s69, %s71
    %p75 = scmp.eq.s32.totalorder %s14, 0
    %p76 = por %p74, %p75
    %p77 = scmp.ne.s32.totalorder %s69, %s71
    %p78 = scmp.eq.s32.totalorder %s19, 1
    %p79 = por %p77, %p78
    %p80 = scmp.ne.s32.totalorder %s71, %s72
    %p81 = scmp.eq.s32.totalorder %s19, 0
    %p82 = por %p80, %p81
    %p83 = scmp.ne.s32.totalorder %s71, %s72
    %p84 = scmp.eq.s32.totalorder %s20, 1
    %p85 = por %p83, %p84
    %p87 = scmp.ne.s32.totalorder %s72, %s86
    %p88 = scmp.eq.s32.totalorder %s20, 0
    %p89 = por %p87, %p88
    %s91 = sadd.s32 %s90, 1
    %p94 = scmp.eq.s32.totalorder %s14, 1
    %p95 = scmp.ne.s32.totalorder %s90, %s92
    %p96 = scmp.eq.s32.totalorder %s14, 0
    %p97 = por %p95, %p96
    %p98 = scmp.ne.s32.totalorder %s90, %s92
    %p99 = scmp.eq.s32.totalorder %s19, 1
    %p100 = por %p98, %p99
    %p101 = scmp.ne.s32.totalorder %s92, %s93
    %p102 = scmp.eq.s32.totalorder %s19, 0
    %p103 = por %p101, %p102
    %p104 = scmp.ne.s32.totalorder %s92, %s93
    %p105 = scmp.eq.s32.totalorder %s20, 1
    %p106 = por %p104, %p105
    %p108 = scmp.ne.s32.totalorder %s93, %s107
    %p109 = scmp.eq.s32.totalorder %s20, 0
    %p110 = por %p108, %p109
    %s112 = sadd.s32 %s111, 1
    %p115 = scmp.eq.s32.totalorder %s14, 1
    %p116 = scmp.ne.s32.totalorder %s111, %s113
    %p117 = scmp.eq.s32.totalorder %s14, 0
    %p118 = por %p116, %p117
    %p119 = scmp.ne.s32.totalorder %s111, %s113
    %p120 = scmp.eq.s32.totalorder %s19, 1
    %p121 = por %p119, %p120
    %p122 = scmp.ne.s32.totalorder %s113, %s114
    %p123 = scmp.eq.s32.totalorder %s19, 0
    %p124 = por %p122, %p123
    %p125 = scmp.ne.s32.totalorder %s113, %s114
    %p126 = scmp.eq.s32.totalorder %s20, 1
    %p127 = por %p125, %p126
    %p129 = scmp.ne.s32.totalorder %s114, %s128
    %p130 = scmp.eq.s32.totalorder %s20, 0
    %p131 = por %p129, %p130
    %s133 = sadd.s32 %s132, 1
    %p136 = scmp.eq.s32.totalorder %s14, 1
    %p137 = scmp.ne.s32.totalorder %s132, %s134
    %p138 = scmp.eq.s32.totalorder %s14, 0
    %p139 = por %p137, %p138
    %p140 = scmp.ne.s32.totalorder %s132, %s134
    %p141 = scmp.eq.s32.totalorder %s19, 1
    %p142 = por %p140, %p141
    %p143 = scmp.ne.s32.totalorder %s134, %s135
    %p144 = scmp.eq.s32.totalorder %s19, 0
    %p145 = por %p143, %p144
    %p146 = scmp.ne.s32.totalorder %s134, %s135
    %p147 = scmp.eq.s32.totalorder %s20, 1
    %p148 = por %p146, %p147
    %p150 = scmp.ne.s32.totalorder %s135, %s149
    %p151 = scmp.eq.s32.totalorder %s20, 0
    %p152 = por %p150, %p151
    %s153 = ssub.s32 %s14, %s21
    %p154 = scmp.eq.s32.totalorder %s153, 0
    %s156 = sadd.s32 %s155, 1
    %s157 = scalar_select %p154, %s155, %s156
    %p160 = pneg %p154
    %p161 = scmp.eq.s32.totalorder %s14, 1
    %p162 = por %p160, %p161
    %p163 = scmp.ne.s32.totalorder %s155, %s158
    %p164 = scmp.eq.s32.totalorder %s14, 0
    %p165 = por %p163, %p164
    %p166 = scmp.ne.s32.totalorder %s155, %s158
    %p167 = scmp.eq.s32.totalorder %s19, 1
    %p168 = por %p166, %p167
    %p169 = scmp.ne.s32.totalorder %s158, %s159
    %p170 = scmp.eq.s32.totalorder %s19, 0
    %p171 = por %p169, %p170
    %p172 = scmp.ne.s32.totalorder %s158, %s159
    %p173 = scmp.eq.s32.totalorder %s20, 1
    %p174 = por %p172, %p173
    %p176 = scmp.ne.s32.totalorder %s159, %s175
    %p177 = scmp.eq.s32.totalorder %s20, 0
    %p178 = por %p176, %p177
    %s179 = ssub.s32 %s14, %s21
    %p180 = scmp.eq.s32.totalorder %s179, 0
    %s182 = sadd.s32 %s181, 1
    %s183 = scalar_select %p180, %s181, %s182
    %p186 = pneg %p180
    %p187 = scmp.eq.s32.totalorder %s14, 1
    %p188 = por %p186, %p187
    %p189 = scmp.ne.s32.totalorder %s181, %s184
    %p190 = scmp.eq.s32.totalorder %s14, 0
    %p191 = por %p189, %p190
    %p192 = scmp.ne.s32.totalorder %s181, %s184
    %p193 = scmp.eq.s32.totalorder %s19, 1
    %p194 = por %p192, %p193
    %p195 = scmp.ne.s32.totalorder %s184, %s185
    %p196 = scmp.eq.s32.totalorder %s19, 0
    %p197 = por %p195, %p196
    %p198 = scmp.ne.s32.totalorder %s184, %s185
    %p199 = scmp.eq.s32.totalorder %s20, 1
    %p200 = por %p198, %p199
    %p202 = scmp.ne.s32.totalorder %s185, %s201
    %p203 = scmp.eq.s32.totalorder %s20, 0
    %p204 = por %p202, %p203
    %p205 = scmp.le.s32.totalorder 1, %s14
    %p206 = scmp.lt.s32.totalorder %s14, 3
    %p207 = pnand %p205, %p206
    %p208 = pneg %p207
    // Predicated region
    $region9: #{net_stage1_forward.1} parent=5 // pred_check
      _
    $region10: #{net_stage1_forward.1} parent=5 // pred_check_branch
      %210 = sbr.rel (%p207) target = $region12
    $region11: #{net_stage1_forward.1} parent=5 // pred_region
      %s211 = ssub.s32 %s14, 1
      // Predicated region
      $region13: #{net_stage1_forward.1} parent=11 // pred_check
        %p212 = pneg %p61
      $region14: #{net_stage1_forward.1} parent=11 // pred_check_branch
        %214 = sbr.rel (%p212) target = $region16
      $region15: #{net_stage1_forward.1} parent=11 // pred_region
        _
      $region16: #{net_stage1_forward.1} parent=11 // pred_fallthru
        _
      // Predicated region
      $region17: #{net_stage1_forward.1} parent=11 // pred_check
        %p215 = pneg %p82
      $region18: #{net_stage1_forward.1} parent=11 // pred_check_branch
        %217 = sbr.rel (%p215) target = $region20
      $region19: #{net_stage1_forward.1} parent=11 // pred_region
        _
      $region20: #{net_stage1_forward.1} parent=11 // pred_fallthru
        _
      // Predicated region
      $region21: #{net_stage1_forward.1} parent=11 // pred_check
        %p218 = pneg %p103
      $region22: #{net_stage1_forward.1} parent=11 // pred_check_branch
        %220 = sbr.rel (%p218) target = $region24
      $region23: #{net_stage1_forward.1} parent=11 // pred_region
        _
      $region24: #{net_stage1_forward.1} parent=11 // pred_fallthru
        _
      // Predicated region
      $region25: #{net_stage1_forward.1} parent=11 // pred_check
        %p221 = pneg %p124
      $region26: #{net_stage1_forward.1} parent=11 // pred_check_branch
        %223 = sbr.rel (%p221) target = $region28
      $region27: #{net_stage1_forward.1} parent=11 // pred_region
        _
      $region28: #{net_stage1_forward.1} parent=11 // pred_fallthru
        _
      // Predicated region
      $region29: #{net_stage1_forward.1} parent=11 // pred_check
        %p224 = pneg %p145
      $region30: #{net_stage1_forward.1} parent=11 // pred_check_branch
        %226 = sbr.rel (%p224) target = $region32
      $region31: #{net_stage1_forward.1} parent=11 // pred_region
        _
      $region32: #{net_stage1_forward.1} parent=11 // pred_fallthru
        _
    $region12: #{net_stage1_forward.1} parent=5 // pred_fallthru
      _
    %p227 = scmp.lt.s32.totalorder %s14, 2
    // Predicated region
    $region33: #{net_stage1_forward.1} parent=5 // pred_check
      %p228 = pneg %p227
    $region34: #{net_stage1_forward.1} parent=5 // pred_check_branch
      %230 = sbr.rel (%p228) target = $region36
    $region35: #{net_stage1_forward.1} parent=5 // pred_region
      // Predicated region
      $region37: #{net_stage1_forward.1} parent=35 // pred_check
        %p231 = pneg %p34
      $region38: #{net_stage1_forward.1} parent=35 // pred_check_branch
        %233 = sbr.rel (%p231) target = $region40
      $region39: #{net_stage1_forward.1} parent=35 // pred_region
        %p234 = scmp.lt.s32.totalorder %s14, 1
        %s235 = scalar_select %p234, %s14, 1
        %s236 = smul.addr %s235, 4
        %s237 = smul.addr %s236, 4
        %s238 = scalar_lea.vmem %s0, %s237
      $region40: #{net_stage1_forward.1} parent=35 // pred_fallthru
        _
    $region36: #{net_stage1_forward.1} parent=5 // pred_fallthru
      _
    %p239 = scmp.le.s32.totalorder 1, %s14
    %p240 = scmp.lt.s32.totalorder %s14, 3
    %p241 = pnand %p239, %p240
    %p242 = pneg %p241
    // Predicated region
    $region41: #{net_stage1_forward.1} parent=5 // pred_check
      _
    $region42: #{net_stage1_forward.1} parent=5 // pred_check_branch
      %244 = sbr.rel (%p241) target = $region44
    $region43: #{net_stage1_forward.1} parent=5 // pred_region
      %s245 = ssub.s32 %s14, 1
      %p246 = scmp.lt.s32.totalorder %s19, 1
      %s247 = scalar_select %p246, %s19, 1
      %s248 = smul.addr %s247, 4
      %s249 = smul.addr %s248, 4
      %s250 = scalar_lea.vmem %s0, %s249
      %p251 = pneg %p40
      %p252 = pneg %p37
      %p253 = pneg %p61
      %p254 = pneg %p58
      %p255 = pneg %p82
      %p256 = pneg %p79
      %p257 = pneg %p103
      %p258 = pneg %p100
      %p259 = pneg %p124
      %p260 = pneg %p121
      %p261 = pneg %p145
      %p262 = pneg %p142
      %p263 = pneg %p171
      %p264 = pneg %p168
      %p265 = scmp.lt.s32.totalorder %s19, 1
      %s266 = scalar_select %p265, %s19, 1
      %s267 = smul.addr %s266, 3
      %s268 = smul.addr %s267, 4
      %s269 = scalar_lea.vmem %s6, %s268
      %p270 = pneg %p197
      %p271 = pneg %p194
      %p272 = scmp.lt.s32.totalorder %s19, 1
      %s273 = scalar_select %p272, %s19, 1
      %s274 = scalar_lea.vmem %s7, %s273
      %p275 = scmp.lt.s32.totalorder %s19, 1
      %s276 = scalar_select %p275, %s19, 1
      %s277 = smul.addr %s276, 4
      %s278 = smul.addr %s277, 4
      %s279 = scalar_lea.vmem %s0, %s278
      %p280 = scmp.lt.s32.totalorder %s19, 1
      %s281 = scalar_select %p280, %s19, 1
      %s282 = smul.addr %s281, 3
      %s283 = smul.addr %s282, 4
      %s284 = scalar_lea.vmem %s6, %s283
      %p285 = scmp.lt.s32.totalorder %s19, 1
      %s286 = scalar_select %p285, %s19, 1
      %s287 = scalar_lea.vmem %s7, %s286
      %v289 = vld [vmem:[%s279] sm:$0xf]
      %v290 = vld [vmem:[%s279 + $0x4] sm:$0xf]
      %v291 = vld [vmem:[%s279 + $0x8] sm:$0xf]
      %v292 = vld [vmem:[%s279 + $0xc] sm:$0xf]
      %v293 = vld [vmem:[%s1] sm:$0xf]
      %v294 = vld [vmem:[%s1 + $0x4] sm:$0xf]
      %v295 = vld [vmem:[%s1 + $0x8] sm:$0xf]
      %v296 = vld [vmem:[%s1 + $0xc] sm:$0xf]
      %v297 = vld [vmem:[%s1 + $0x10] sm:$0xf]
      %v298 = vld [vmem:[%s1 + $0x14] sm:$0xf]
      %v303 = vunpack.c.l.b16 %v289
      %v304 = vunpack.c.l.b16 %v290
      %v305 = vunpack.c.l.b16 %v291
      %v306 = vunpack.c.l.b16 %v292
      %v307 = vpack.c.b16 %v304, %v303
      %v308 = vpack.c.b16 %v306, %v305
      %v315 = vunpack.c.l.b16 %v293
      %v316 = vunpack.c.l.b16 %v294
      %v317 = vunpack.c.l.b16 %v295
      %v318 = vunpack.c.l.b16 %v296
      %v319 = vunpack.c.l.b16 %v297
      %v320 = vunpack.c.l.b16 %v298
      %v321 = vpack.c.b16 %v316, %v315
      %v322 = vpack.c.b16 %v318, %v317
      %v323 = vpack.c.b16 %v320, %v319
      %vm327 = vcmask 392192
      %v329 = vsel %vm327, %v307, 0
      %v332 = vsel %vm327, %v308, 0
      %334 = vmatpush.bf16.msra.mxu0 0
      %335 = vmatpush.bf16.msra.mxu0 0
      %336 = vmatpush.bf16.msra.mxu0 0
      %337 = vmatpush.bf16.msra.mxu0 0
      %338 = vmatpush.bf16.msra.mxu0 0
      %339 = vmatpush.bf16.msra.mxu0 %v323
      %340 = vmatpush.bf16.msra.mxu0 %v322
      %341 = vmatpush.bf16.msra.mxu0 %v321
      %342 = vmatmul.bf16.gmra.mxu0 %v329
      %v343 = vpop.f32.mrf.mxu0
      %v344 = vadd.f32 0.0, %v343
      %v345 = vpop.f32.mrf.mxu0
      %v346 = vadd.f32 0.0, %v345
      %347 = vmatmul.bf16.gmra.mxu0 %v332
      %v348 = vpop.f32.mrf.mxu0
      %v349 = vadd.f32 0.0, %v348
      %v350 = vpop.f32.mrf.mxu0
      %351 = vdwg.mxu0
      %v352 = vld [vmem:[%s2] sm:$0xff]
      %v353 = vld [vmem:[%s2 + $0x8] sm:$0xff]
      %v354 = vld [vmem:[%s2 + $0x10] sm:$0xff]
      %v355 = vadd.f32 %v344, %v352
      %v356 = vadd.f32 %v346, %v353
      %v357 = vadd.f32 %v349, %v354
      %358 = vadd.xlane.f32.xlu0 %v355
      %v359 = vpop.xlane.xlu0 %358
      %360 = vadd.xlane.f32.xlu0 %v356
      %v361 = vpop.xlane.xlu0 %360
      %362 = vadd.xlane.f32.xlu0 %v357
      %v363 = vpop.xlane.xlu0 %362
      %v364 = vmul.f32 %v355, %v355
      %v365 = vmul.f32 %v356, %v356
      %v366 = vmul.f32 %v357, %v357
      %367 = vadd.xlane.f32.xlu0 %v364
      %v368 = vpop.xlane.xlu0 %367
      %369 = vadd.xlane.f32.xlu0 %v365
      %v370 = vpop.xlane.xlu0 %369
      %371 = vadd.xlane.f32.xlu0 %v366
      %v372 = vpop.xlane.xlu0 %371
      %v373 = vmul.f32 %v359, 0.0078125
      %v374 = vmul.f32 %v361, 0.0078125
      %v375 = vmul.f32 %v363, 0.0078125
      %v376 = vmul.f32 %v368, 0.0078125
      %v377 = vmul.f32 %v370, 0.0078125
      %v378 = vmul.f32 %v372, 0.0078125
      %v379 = vmul.f32 %v373, %v373
      %v380 = vmul.f32 %v374, %v374
      %v381 = vmul.f32 %v375, %v375
      %v382 = vsub.f32 %v376, %v379
      %v383 = vsub.f32 %v377, %v380
      %v384 = vsub.f32 %v378, %v381
      %v385 = vsub.f32 %v355, %v373
      %v386 = vsub.f32 %v356, %v374
      %v387 = vsub.f32 %v357, %v375
      %v388 = vadd.f32 %v382, 1e-05
      %v389 = vadd.f32 %v383, 1e-05
      %v390 = vadd.f32 %v384, 1e-05
      %v391 = vrsqrt.pop %v388
      %v392 = vmul.f32 %v391, %v388
      %v393 = vmul.f32 %v392, %v391
      %v394 = vmul.f32 0.5, %v393
      %v395 = vsub.f32 1.5, %v394
      %v396 = vmul.f32 %v391, %v395
      %vm397 = vweird.f32 %v388
      %vm398 = vweird.f32 %v391
      %vm399 = vmor %vm397, %vm398
      %v400 = vsel %vm399, %v391, %v396
      %v401 = vrsqrt.pop %v389
      %v402 = vmul.f32 %v401, %v389
      %v403 = vmul.f32 %v402, %v401
      %v404 = vmul.f32 0.5, %v403
      %v405 = vsub.f32 1.5, %v404
      %v406 = vmul.f32 %v401, %v405
      %vm407 = vweird.f32 %v389
      %vm408 = vweird.f32 %v401
      %vm409 = vmor %vm407, %vm408
      %v410 = vsel %vm409, %v401, %v406
      %v411 = vrsqrt.pop %v390
      %v412 = vmul.f32 %v411, %v390
      %v413 = vmul.f32 %v412, %v411
      %v414 = vmul.f32 0.5, %v413
      %v415 = vsub.f32 1.5, %v414
      %v416 = vmul.f32 %v411, %v415
      %vm417 = vweird.f32 %v390
      %vm418 = vweird.f32 %v411
      %vm419 = vmor %vm417, %vm418
      %v420 = vsel %vm419, %v411, %v416
      %v421 = vmul.f32 %v385, %v400
      %v422 = vmul.f32 %v386, %v410
      %v423 = vmul.f32 %v387, %v420
      %v424 = vld [vmem:[%s3] sm:$0x1]
      %v426 = vperm.slane %v424, 0
      %v428 = vmul.f32 %v421, %v426
      %v429 = vmul.f32 %v422, %v426
      %v430 = vmul.f32 %v423, %v426
      %v431 = vld [vmem:[%s4] sm:$0x1]
      %v433 = vperm.slane %v431, 0
      %v435 = vadd.f32 %v428, %v433
      %v436 = vadd.f32 %v429, %v433
      %v437 = vadd.f32 %v430, %v433
      %v438 = vpack.c.bf16 %v435, %v435
      %v439 = vpack.c.bf16 %v436, %v436
      %v440 = vpack.c.bf16 %v437, %v437
      %441 = vst [vmem:[%s284] sm:$0xf] %v438
      %442 = vst [vmem:[%s284 + $0x4] sm:$0xf] %v439
      %vm443 = vcmask 1040384
      %vm444 = vsmask.f32 256
      %vm445 = vmand %vm443, %vm444
      %v446 = vld [vmem:[%s284 + $0x8] sm:$0x1]
      %v447 = vsel %vm445, %v440, %v446
      %448 = vst [vmem:[%s284 + $0x8] sm:$0x1] %v447
      %v449 = vld [vmem:[%s5] sm:$0x1]
      %v450 = vmul.f32 %v435, %v449
      %vm451 = vcmask 1040384
      %v452 = vsel %vm451, %v450, 0.0
      %453 = vadd.xlane.f32.xlu0 %v452
      %v454 = vpop.xlane.xlu0 %453
      %455 = vst [vmem:[%s287] sm:$0x1] %v454
      %p456 = scmp.lt.s32.totalorder %s19, 1
      %s457 = scalar_select %p456, %s19, 1
      %s458 = smul.addr %s457, 3
      %s459 = smul.addr %s458, 4
      %s460 = scalar_lea.vmem %s6, %s459
      %p461 = scmp.lt.s32.totalorder %s19, 1
      %s462 = scalar_select %p461, %s19, 1
      %s463 = scalar_lea.vmem %s7, %s462
      // Predicated region
      $region45: #{net_stage1_forward.1} parent=43 // pred_check
        %p464 = pneg %p168
      $region46: #{net_stage1_forward.1} parent=43 // pred_check_branch
        %466 = sbr.rel (%p464) target = $region48
      $region47: #{net_stage1_forward.1} parent=43 // pred_region
        _
      $region48: #{net_stage1_forward.1} parent=43 // pred_fallthru
        _
      // Predicated region
      $region49: #{net_stage1_forward.1} parent=43 // pred_check
        %p467 = pneg %p194
      $region50: #{net_stage1_forward.1} parent=43 // pred_check_branch
        %469 = sbr.rel (%p467) target = $region52
      $region51: #{net_stage1_forward.1} parent=43 // pred_region
        _
      $region52: #{net_stage1_forward.1} parent=43 // pred_fallthru
        _
    $region44: #{net_stage1_forward.1} parent=5 // pred_fallthru
      _
    %p470 = scmp.le.s32.totalorder 2, %s14
    // Predicated region
    $region53: #{net_stage1_forward.1} parent=5 // pred_check
      %p471 = pneg %p470
    $region54: #{net_stage1_forward.1} parent=5 // pred_check_branch
      %473 = sbr.rel (%p471) target = $region56
    $region55: #{net_stage1_forward.1} parent=5 // pred_region
      %s474 = ssub.s32 %s14, 2
      // Predicated region
      $region57: #{net_stage1_forward.1} parent=55 // pred_check
        %p475 = pneg %p174
      $region58: #{net_stage1_forward.1} parent=55 // pred_check_branch
        %477 = sbr.rel (%p475) target = $region60
      $region59: #{net_stage1_forward.1} parent=55 // pred_region
        %p478 = scmp.lt.s32.totalorder %s20, 1
        %s479 = scalar_select %p478, %s20, 1
        %s480 = smul.addr %s479, 3
        %s481 = smul.addr %s480, 4
        %s482 = scalar_lea.vmem %s6, %s481
      $region60: #{net_stage1_forward.1} parent=55 // pred_fallthru
        _
      // Predicated region
      $region61: #{net_stage1_forward.1} parent=55 // pred_check
        %p483 = pneg %p200
      $region62: #{net_stage1_forward.1} parent=55 // pred_check_branch
        %485 = sbr.rel (%p483) target = $region64
      $region63: #{net_stage1_forward.1} parent=55 // pred_region
        %p486 = scmp.lt.s32.totalorder %s20, 1
        %s487 = scalar_select %p486, %s20, 1
        %s488 = scalar_lea.vmem %s7, %s487
      $region64: #{net_stage1_forward.1} parent=55 // pred_fallthru
        _
    $region56: #{net_stage1_forward.1} parent=5 // pred_fallthru
      _
  $region6: #{net_stage1_forward.1} parent=0 // loop_footer
    %s18 = sadd.s32 1, %s14
  $region7: #{net_stage1_forward.1} parent=0 // loop_footer_branch
    %13 = sbr.rel target = $region3
  $region8: #{net_stage1_forward.1} parent=0 // loop_exit
    _

</llo_original>
